<compile_context>
chip_gen: v7x
topology: tpu7x:2x2x1
jax: 0.10.0
libtpu: 0.0.40
codegen_flags: <defaults>
</compile_context>

<pallas_src>
import functools
import math

import jax
import jax.numpy as jnp
from jax.experimental import pallas as pl
from jax.experimental.pallas import tpu as pltpu


# f32 minimax coefficients (Cephes sinf/cosf), valid for |theta| <= pi/4.
_S1 = -1.6666654611e-1
_S2 = 8.3321608736e-3
_S3 = -1.9515295891e-4
_C1 = 4.166664568298827e-2
_C2 = -1.388731625493765e-3
_C3 = 2.443315711809948e-5
_HALF_PI = 0.5 * math.pi


def gfp_kernel(x_ref, w_ref, o_ref, *, x_resident):
    # x_ref: (B_pad, 1) resident  OR  (TB, 1) per-step tile
    # w_ref: (1, H) resident      o_ref: (TB, 2*H) output tile
    tb = o_ref.shape[0]
    h = w_ref.shape[1]

    if x_resident:
        row0 = pl.multiple_of(pl.program_id(0) * tb, 8)
        x_tile = x_ref[pl.ds(row0, tb), :]              # slice the resident buffer
    else:
        x_tile = x_ref[...]

    # Angle measured in quarter-turns: q = 4 * x * W.  The power-of-two factor
    # 4 is exact in f32 and applied to the narrow (TB,1) operand, not the
    # (TB,H) broadcast.  Compute stays f32 regardless of input dtype.
    x4 = x_tile.astype(jnp.float32) * 4.0               # (TB, 1)
    q = x4 * w_ref[...].astype(jnp.float32)             # (TB, H) quarter-turns

    # ONE shared, period-exact range reduction for both sin and cos:
    # nearest quarter-turn k, remainder f in [-0.5, 0.5], theta in [-pi/4, pi/4].
    k = jnp.round(q)
    f = q - k                                           # exact (Sterbenz)
    theta = f * _HALF_PI
    z = theta * theta

    sin_p = ((_S3 * z + _S2) * z + _S1) * z * theta + theta
    cos_p = ((_C3 * z + _C2) * z + _C1) * (z * z) - 0.5 * z + 1.0

    # Quadrant fix-up: total angle = k*(pi/2) + theta.
    ki = k.astype(jnp.int32)
    swap = (ki & 1) != 0                                # odd quarter-turn: swap sin/cos
    sin_v = jnp.where(swap, cos_p, sin_p)
    cos_v = jnp.where(swap, sin_p, cos_p)
    sin_out = jnp.where((ki & 2) != 0, -sin_v, sin_v)          # k mod 4 in {2,3}
    cos_out = jnp.where(((ki + 1) & 2) != 0, -cos_v, cos_v)    # k mod 4 in {1,2}

    # Static half-slices; lane-dense (unmasked vst) when H % 128 == 0.
    o_ref[:, :h] = sin_out.astype(o_ref.dtype)
    o_ref[:, h:] = cos_out.astype(o_ref.dtype)


def _round_up(n, m):
    return (n + m - 1) // m * m


def _choose_batch_tile(batch, embed_dim):
    # Output double-buffer = 2 * TB * embed_dim * 4 bytes; keep it <= ~8 MiB so
    # the kernel fits every generation's scoped VMEM without flag overrides
    # (v5e 16 MiB default scoped, v7x 64 MiB physical).
    vmem_budget = 8 * 1024 * 1024
    tb_cap = max(8, (vmem_budget // (2 * embed_dim * 4)) // 8 * 8)
    tb_cap = min(tb_cap, 1024)
    # Aim for >= 2 grid steps so the "parallel" batch axis can shard across the
    # two TensorCores on v7x (neutral on single-TC v5e/v6e).
    tb = max(8, _round_up(pl.cdiv(batch, 2), 8))
    return min(tb, tb_cap, _round_up(batch, 8))


# Keep x fully VMEM-resident (one DMA for the whole run) unless it is huge.
# A (rows, 1) f32 buffer pads to 128 lanes -> 512 B per row in VMEM.
_X_RESIDENT_MAX_ROWS = 2048


def gaussian_fourier_projection(x, W):
    """x: (B,) time steps; W: (embed_dim//2,) fixed Gaussian weights.

    Returns (B, embed_dim) = concat([sin(2*pi*x*W), cos(2*pi*x*W)], axis=-1).
    """
    B = x.shape[0]
    H = W.shape[0]
    embed_dim = 2 * H
    out_dtype = jnp.result_type(x.dtype, W.dtype)

    TB = _choose_batch_tile(B, embed_dim)
    num_blocks = pl.cdiv(B, TB)
    B_pad = num_blocks * TB

    x2d = x.reshape(B, 1)          # sublane axis = batch, single lane
    w2d = W.reshape(1, H)          # lane-dense weights, resident across grid

    x_resident = B_pad <= _X_RESIDENT_MAX_ROWS
    if x_resident:
        if B_pad != B:
            x2d = jnp.pad(x2d, ((0, B_pad - B), (0, 0)))
        x_spec = pl.BlockSpec((B_pad, 1), lambda i: (0, 0))   # one DMA, resident
    else:
        x_spec = pl.BlockSpec((TB, 1), lambda i: (i, 0))      # per-step tile

    out = pl.pallas_call(
        functools.partial(gfp_kernel, x_resident=x_resident),
        out_shape=jax.ShapeDtypeStruct((B, embed_dim), out_dtype),
        grid=(num_blocks,),
        in_specs=[
            x_spec,
            pl.BlockSpec((1, H), lambda i: (0, 0)),           # W resident
        ],
        out_specs=pl.BlockSpec((TB, embed_dim), lambda i: (i, 0)),
        compiler_params=pltpu.CompilerParams(
            dimension_semantics=("parallel",),                # v7x: shard batch over 2 TCs
        ),
    )(x2d, w2d)

    return out


def reference_forward(x, W):
    x_proj = x[:, None] * W[None, :] * (2.0 * math.pi)
    return jnp.concatenate([jnp.sin(x_proj), jnp.cos(x_proj)], axis=-1)


if __name__ == "__main__":
    key = jax.random.PRNGKey(0)
    k_x, k_w, k_x2 = jax.random.split(key, 3)

    B = 8
    embed_dim = 256           # half = 128 -> lane-aligned sin/cos halves
    scale = 30.0

    # Fixed (non-trainable) Gaussian random features, as in the module's __init__.
    W = jax.random.normal(k_w, (embed_dim // 2,), dtype=jnp.float32) * scale
    # Time steps in [0, 1), like diffusion timesteps.
    x = jax.random.uniform(k_x, (B,), dtype=jnp.float32)

    out = jax.block_until_ready(gaussian_fourier_projection(x, W))
    ref = reference_forward(x, W)
    assert out.shape == (B, embed_dim), out.shape
    # The reference's f32 sin/cos on arguments up to hundreds of radians carries
    # a few 1e-4 of range-reduction slack; the kernel's period-exact reduction
    # is tighter, so compare loosely.
    assert jnp.allclose(out, ref, atol=2e-3, rtol=2e-3), "mismatch vs reference"

    # Second config: ragged multi-block grid (exercises resident-x slicing and
    # the masked final output block).
    B2 = 20
    x2 = jax.random.uniform(k_x2, (B2,), dtype=jnp.float32)
    out2 = jax.block_until_ready(gaussian_fourier_projection(x2, W))
    ref2 = reference_forward(x2, W)
    assert out2.shape == (B2, embed_dim), out2.shape
    assert jnp.allclose(out2, ref2, atol=2e-3, rtol=2e-3), "mismatch vs reference (ragged)"

    print("KERNEL_OK")
</pallas_src>

<mosaic_0001>
module attributes {stable_mosaic.version = 11 : i64} {
  func.func @gfp_kernel(%arg0: i32, %arg1: memref<8x1xf32, #tpu.memory_space<vmem>>, %arg2: memref<1x128xf32, #tpu.memory_space<vmem>>, %arg3: memref<8x256xf32, #tpu.memory_space<vmem>>) attributes {dimension_semantics = [#tpu.dimension_semantics<parallel>], iteration_bounds = array<i64: 1>, scalar_prefetch = 0 : i64, scratch_operands = 0 : i64, tpu.core_type = #tpu.core_type<tc>, window_params = [{pipeline_mode = #tpu.pipeline_mode<synchronous>, transform_indices = @transform_0, window_bounds = array<i64: 8, 1>}, {pipeline_mode = #tpu.pipeline_mode<synchronous>, transform_indices = @transform_1, window_bounds = array<i64: 1, 128>}, {transform_indices = @transform_2, window_bounds = array<i64: 8, 256>}]} {
    %c8_i32 = arith.constant 8 : i32
    %0 = arith.muli %arg0, %c8_i32 : i32
    %1 = tpu.assume_multiple %0, 8 : i32
    %2 = arith.index_cast %1 : i32 to index
    %c0 = arith.constant 0 : index
    %3 = vector.load %arg1[%2, %c0] : memref<8x1xf32, #tpu.memory_space<vmem>>, vector<8x1xf32>
    %cst = arith.constant 4.000000e+00 : f32
    %4 = vector.broadcast %cst : f32 to vector<8x1xf32>
    %5 = arith.mulf %3, %4 : vector<8x1xf32>
    %c0_0 = arith.constant 0 : index
    %c0_1 = arith.constant 0 : index
    %6 = vector.load %arg2[%c0_0, %c0_1] : memref<1x128xf32, #tpu.memory_space<vmem>>, vector<1x128xf32>
    %7 = vector.broadcast %5 : vector<8x1xf32> to vector<8x128xf32>
    %8 = vector.broadcast %6 : vector<1x128xf32> to vector<8x128xf32>
    %9 = arith.mulf %7, %8 : vector<8x128xf32>
    %10 = math.roundeven %9 : vector<8x128xf32>
    %11 = arith.subf %9, %10 : vector<8x128xf32>
    %cst_2 = arith.constant 1.57079637 : f32
    %12 = vector.broadcast %cst_2 : f32 to vector<8x128xf32>
    %13 = arith.mulf %11, %12 : vector<8x128xf32>
    %14 = arith.mulf %13, %13 : vector<8x128xf32>
    %cst_3 = arith.constant -1.95152956E-4 : f32
    %15 = vector.broadcast %cst_3 : f32 to vector<8x128xf32>
    %16 = arith.mulf %15, %14 : vector<8x128xf32>
    %cst_4 = arith.constant 0.00833216123 : f32
    %17 = vector.broadcast %cst_4 : f32 to vector<8x128xf32>
    %18 = arith.addf %16, %17 : vector<8x128xf32>
    %19 = arith.mulf %18, %14 : vector<8x128xf32>
    %cst_5 = arith.constant -0.166666552 : f32
    %20 = vector.broadcast %cst_5 : f32 to vector<8x128xf32>
    %21 = arith.addf %19, %20 : vector<8x128xf32>
    %22 = arith.mulf %21, %14 : vector<8x128xf32>
    %23 = arith.mulf %22, %13 : vector<8x128xf32>
    %24 = arith.addf %23, %13 : vector<8x128xf32>
    %cst_6 = arith.constant 2.44331568E-5 : f32
    %25 = vector.broadcast %cst_6 : f32 to vector<8x128xf32>
    %26 = arith.mulf %25, %14 : vector<8x128xf32>
    %cst_7 = arith.constant -0.00138873165 : f32
    %27 = vector.broadcast %cst_7 : f32 to vector<8x128xf32>
    %28 = arith.addf %26, %27 : vector<8x128xf32>
    %29 = arith.mulf %28, %14 : vector<8x128xf32>
    %cst_8 = arith.constant 0.0416666456 : f32
    %30 = vector.broadcast %cst_8 : f32 to vector<8x128xf32>
    %31 = arith.addf %29, %30 : vector<8x128xf32>
    %32 = arith.mulf %14, %14 : vector<8x128xf32>
    %33 = arith.mulf %31, %32 : vector<8x128xf32>
    %cst_9 = arith.constant 5.000000e-01 : f32
    %34 = vector.broadcast %cst_9 : f32 to vector<8x128xf32>
    %35 = arith.mulf %34, %14 : vector<8x128xf32>
    %36 = arith.subf %33, %35 : vector<8x128xf32>
    %cst_10 = arith.constant 1.000000e+00 : f32
    %37 = vector.broadcast %cst_10 : f32 to vector<8x128xf32>
    %38 = arith.addf %36, %37 : vector<8x128xf32>
    %39 = arith.fptosi %10 : vector<8x128xf32> to vector<8x128xi32>
    %c1_i32 = arith.constant 1 : i32
    %40 = vector.broadcast %c1_i32 : i32 to vector<8x128xi32>
    %41 = arith.andi %39, %40 : vector<8x128xi32>
    %c0_i32 = arith.constant 0 : i32
    %42 = vector.broadcast %c0_i32 : i32 to vector<8x128xi32>
    %43 = arith.cmpi ne, %41, %42 : vector<8x128xi32>
    %44 = arith.select %43, %38, %24 : vector<8x128xi1>, vector<8x128xf32>
    %45 = arith.select %43, %24, %38 : vector<8x128xi1>, vector<8x128xf32>
    %c2_i32 = arith.constant 2 : i32
    %46 = vector.broadcast %c2_i32 : i32 to vector<8x128xi32>
    %47 = arith.andi %39, %46 : vector<8x128xi32>
    %c0_i32_11 = arith.constant 0 : i32
    %48 = vector.broadcast %c0_i32_11 : i32 to vector<8x128xi32>
    %49 = arith.cmpi ne, %47, %48 : vector<8x128xi32>
    %cst_12 = arith.constant 0.000000e+00 : f32
    %50 = vector.broadcast %cst_12 : f32 to vector<8x128xf32>
    %51 = arith.subf %50, %44 : vector<8x128xf32>
    %52 = arith.select %49, %51, %44 : vector<8x128xi1>, vector<8x128xf32>
    %c1_i32_13 = arith.constant 1 : i32
    %53 = vector.broadcast %c1_i32_13 : i32 to vector<8x128xi32>
    %54 = arith.addi %39, %53 : vector<8x128xi32>
    %c2_i32_14 = arith.constant 2 : i32
    %55 = vector.broadcast %c2_i32_14 : i32 to vector<8x128xi32>
    %56 = arith.andi %54, %55 : vector<8x128xi32>
    %c0_i32_15 = arith.constant 0 : i32
    %57 = vector.broadcast %c0_i32_15 : i32 to vector<8x128xi32>
    %58 = arith.cmpi ne, %56, %57 : vector<8x128xi32>
    %cst_16 = arith.constant 0.000000e+00 : f32
    %59 = vector.broadcast %cst_16 : f32 to vector<8x128xf32>
    %60 = arith.subf %59, %45 : vector<8x128xf32>
    %61 = arith.select %58, %60, %45 : vector<8x128xi1>, vector<8x128xf32>
    %c0_17 = arith.constant 0 : index
    %c0_18 = arith.constant 0 : index
    %62 = vector.load %arg3[%c0_17, %c0_18] : memref<8x256xf32, #tpu.memory_space<vmem>>, vector<8x128xf32>
    tpu.vector_store %arg3[%c0_17, %c0_18], %52 {strides = array<i32>} : memref<8x256xf32, #tpu.memory_space<vmem>>, vector<8x128xf32>,
    %c0_19 = arith.constant 0 : index
    %c128 = arith.constant 128 : index
    %63 = vector.load %arg3[%c0_19, %c128] : memref<8x256xf32, #tpu.memory_space<vmem>>, vector<8x128xf32>
    tpu.vector_store %arg3[%c0_19, %c128], %61 {strides = array<i32>} : memref<8x256xf32, #tpu.memory_space<vmem>>, vector<8x128xf32>,
    return
  }
  func.func @transform_0(%arg0: i32) -> (i32, i32) {
    %c0_i32 = arith.constant 0 : i32
    %c0_i32_0 = arith.constant 0 : i32
    %c0_i32_1 = arith.constant 0 : i32
    return %c0_i32, %c0_i32_0 : i32, i32
  }
  func.func @transform_1(%arg0: i32) -> (i32, i32) {
    %c0_i32 = arith.constant 0 : i32
    %c0_i32_0 = arith.constant 0 : i32
    %c0_i32_1 = arith.constant 0 : i32
    return %c0_i32, %c0_i32_0 : i32, i32
  }
  func.func @transform_2(%arg0: i32) -> (i32, i32) {
    %c0_i32 = arith.constant 0 : i32
    %c0_i32_0 = arith.constant 0 : i32
    return %arg0, %c0_i32 : i32, i32
  }
}

</mosaic_0001>

<llo_original>
// kernel: tpu_custom_call.1
$region0: #{tpu_custom_call.1}
  #allocation0 [shape = 'u32[]', space=smem, size = 0x4, offset = 0x4, fixed_abs, tag = 'smem constant byte address 0x4 - core index']
  #allocation1 [shape = 'u32[144,128]{1,0:T(1,128)}', space=vmem, size = 0x12000, scoped, tag = 'internal scratch']
  %s0 = inlined_call_operand.vmem [shape: f32[8,1], index: 0, kind: input, shape index: {}]
  %s1 = inlined_call_operand.vmem [shape: f32[1,128], index: 1, kind: input, shape index: {}]
  %s2 = inlined_call_operand.hbm [shape: f32[8,256], index: 2, kind: output, shape index: {}]
  %s3 = sld [smem:[#allocation0]]
  $region18: #{tpu_custom_call.1} parent=0
    _
  %s5 = ssub.s32 1, %s3
  %s6 = scalar_select 0, %s5, %s3
  $region1: #{tpu_custom_call.1} parent=0
    #allocation2 [shape = 'u8[8192]{0}', space=vmem, size = 0x2000, scoped, tag = 'output window, operand 0, single buffered']
    #allocation3 [shape = 's32[1]{0}', space=sflag, size = 0x4, scoped, tag = 'scoped memory for tpu_custom_call.1']
    %7 = vsyncpa [#allocation3], 0
    // Predicated region
    $region2: #{tpu_custom_call.1} parent=1 // pred_check
      _
    $region3: #{tpu_custom_call.1} parent=1 // pred_check_branch
      %9 = sbr.rel (0) target = $region5
    $region4: #{tpu_custom_call.1} parent=1 // pred_region
      _
    $region5: #{tpu_custom_call.1} parent=1 // pred_fallthru
      _
    // Predicated region
    $region6: #{tpu_custom_call.1} parent=1 // pred_check
      _
    $region7: #{tpu_custom_call.1} parent=1 // pred_check_branch
      %11 = sbr.rel (0) target = $region9
    $region8: #{tpu_custom_call.1} parent=1 // pred_region
      _
    $region9: #{tpu_custom_call.1} parent=1 // pred_fallthru
      _
    %s12 = smul.u32 0, 8
    %s13 = scalar_lea.vmem %s0, %s12
    %v14 = vld [vmem:[%s13] sm:$0xff]
    %v15 = vmul.f32 %v14, 4.0
    %v16 = vld [vmem:[%s1] sm:$0x1]
    %18 = vset.pattern.permute.xlu0 0
    %19 = vperm.xlu0 %18, %v15
    %v20 = vpop.permute.xlu0 %19
    %v23 = vlaneseq
    %v24 = vshrl.u32 %v23, 7
    %v25 = vsub.s32 0, %v24
    %v26 = vrot.slane %v16, %v25
    %v28 = vmul.f32 %v20, %v26
    %v29 = vround.ne.pseudo %v28
    %v30 = vsub.f32 %v28, %v29
    %v31 = vmul.f32 %v30, 1.5707964
    %v32 = vmul.f32 %v31, %v31
    %v33 = vmul.f32 %v32, -0.00019515296
    %v34 = vadd.f32 %v33, 0.008332161
    %v35 = vmul.f32 %v34, %v32
    %v36 = vadd.f32 %v35, -0.16666655
    %v37 = vmul.f32 %v36, %v32
    %v38 = vmul.f32 %v37, %v31
    %v39 = vadd.f32 %v38, %v31
    %v40 = vmul.f32 %v32, 2.4433157e-05
    %v41 = vadd.f32 %v40, -0.0013887316
    %v42 = vmul.f32 %v41, %v32
    %v43 = vadd.f32 %v42, 0.041666646
    %v44 = vmul.f32 %v32, %v32
    %v45 = vmul.f32 %v43, %v44
    %v46 = vmul.f32 %v32, 0.5
    %v47 = vsub.f32 %v45, %v46
    %v48 = vadd.f32 %v47, 1.0
    %v49 = vcvt.f32.s32.ties.to.even %v28
    %v50 = vand.u32 %v49, 1
    %vm51 = vcmp.ne.s32.totalorder %v50, 0
    %v52 = vsel %vm51, %v48, %v39
    %v53 = vsel %vm51, %v39, %v48
    %v54 = vand.u32 %v49, 2
    %vm55 = vcmp.ne.s32.totalorder %v54, 0
    %v56 = vsub.f32 0.0, %v52
    %v57 = vsel %vm55, %v56, %v52
    %v58 = vadd.s32 %v49, 1
    %v59 = vand.u32 %v58, 2
    %vm60 = vcmp.ne.s32.totalorder %v59, 0
    %v61 = vsub.f32 0.0, %v53
    %v62 = vsel %vm60, %v61, %v53
    %63 = vst [vmem:[#allocation2] sm:$0xff] %v57
    %64 = vst [vmem:[#allocation2 + $0x8] sm:$0xff] %v62
    // Predicated region
    $region10: #{tpu_custom_call.1} parent=1 // pred_check
      _
    $region11: #{tpu_custom_call.1} parent=1 // pred_check_branch
      %66 = sbr.rel (0) target = $region13
    $region12: #{tpu_custom_call.1} parent=1 // pred_region
      %s68 = ssub.s32 256, 256
      %69 = vsyncadd [#allocation3], %s68
      %s71 = sshll.u32 [#allocation2], 4
      %s72 = int_to_ptr.vmem [resolvable:$true] %s71
      %74 = dma.vmem_to_hbm [thread:$0]  %s72, 256, %s2, [#allocation3]
    $region13: #{tpu_custom_call.1} parent=1 // pred_fallthru
      _
    // Predicated region
    $region14: #{tpu_custom_call.1} parent=1 // pred_check
      _
    $region15: #{tpu_custom_call.1} parent=1 // pred_check_branch
      %76 = sbr.rel (0) target = $region17
    $region16: #{tpu_custom_call.1} parent=1 // pred_region
      %77 = dma.done [#allocation3], 256
    $region17: #{tpu_custom_call.1} parent=1 // pred_fallthru
      _
    %78 = vsyncpa [#allocation3], 1

</llo_original>
